<compile_context>
chip_gen: v7x
topology: tpu7x:2x2x1
jax: 0.10.0
libtpu: 0.0.40
codegen_flags: <defaults>
</compile_context>

<pallas_src>
import functools

import jax
import jax.numpy as jnp
from jax.experimental import pallas as pl
from jax.experimental.pallas import tpu as pltpu


def _round_up(x, m):
    return (x + m - 1) // m * m


def _cdiv(a, b):
    return -(-a // b)


def _vmem_plan():
    """Per-generation (tiling budget, explicit vmem_limit_bytes).

    v5e/v6e have 128 MiB physical VMEM (16/32 MiB default scoped limit), v7x has
    64 MiB.  `budget` is what the tile pickers plan against; `limit` is handed to
    Mosaic with headroom for compiler-internal scratch.
    """
    kind = ""
    try:
        kind = jax.devices()[0].device_kind.lower()
    except Exception:
        pass
    if "v7" in kind:       # 64 MiB physical, 2 TensorCores
        return 24 << 20, 44 << 20
    if "v6" in kind:       # 128 MiB physical
        return 48 << 20, 80 << 20
    if "v5" in kind:       # v5e: 128 MiB physical but lowest HBM BW / 1 vst slot
        return 20 << 20, 40 << 20
    return 12 << 20, None  # unknown chip: stay under default scoped limits


def _const_spec(shape):
    """Constant-index block (weights / bias): fetched once per launch.
    Single-buffered (pl.Buffered(1)) to save VMEM since its index never changes."""
    index_map = lambda *_: (0,) * len(shape)
    try:
        return pl.BlockSpec(shape, index_map, pipeline_mode=pl.Buffered(1))
    except Exception:   # keep running on jax versions without pipeline_mode
        return pl.BlockSpec(shape, index_map)


# ------------------- fused linear + L-slice + mask->NaN (token / cls) --------
def _linear_mask_kernel(x_ref, m_ref, w_ref, b_ref, o_ref, *, out_dim):
    # x_ref: (TM, H) bf16 | m_ref: (TM, 1) i32 | w_ref: (H, Lp) bf16
    # b_ref: (1, Lp) f32  | o_ref: (TM, out_dim) f32
    y = jnp.dot(x_ref[...], w_ref[...], preferred_element_type=jnp.float32) + b_ref[...]
    y = y[:, :out_dim]                        # fused L-slice (no extra XLA pass)
    keep = m_ref[...] != 0                    # (TM, 1), broadcast over lanes
    o_ref[...] = jnp.where(keep, y, jnp.nan)  # fused attention-mask -> NaN


def _pick_tm(M, H, out_dim, Lp, budget):
    if M <= 1024:
        return M   # single block; "== full dim" always satisfies the (8,128) rule
    per_row = (2 * H * 2            # x block (bf16), double-buffered
               + 2 * 4              # mask block (i32), double-buffered
               + 2 * out_dim * 4    # output block (f32), double-buffered
               + Lp * 4)            # f32 h row before the slice
    fixed = H * Lp * 2 + Lp * 4     # single-buffered weights / bias
    tm = int(max(budget - fixed, per_row * 256) // per_row)
    tm = max(256, min(tm, 2048))
    tm = (tm // 256) * 256
    return min(tm, _round_up(M, 256))


def pallas_linear_masked(x2d, mask1d, w, b, out_dim, *, budget, vmem_limit):
    """x2d: (M, H) bf16, mask1d: (M,), w: (H, Lp) bf16, b: (1, Lp) f32
    -> (M, out_dim) f32 with NaN wherever mask == 0 (linear + slice + mask fused)."""
    M, H = x2d.shape
    Lp = w.shape[1]
    tm = _pick_tm(M, H, out_dim, Lp, budget)
    mask2d = mask1d.reshape(M, 1).astype(jnp.int32)
    return pl.pallas_call(
        functools.partial(_linear_mask_kernel, out_dim=out_dim),
        out_shape=jax.ShapeDtypeStruct((M, out_dim), jnp.float32),
        grid=(_cdiv(M, tm),),
        in_specs=[
            pl.BlockSpec((tm, H), lambda i: (i, 0)),
            pl.BlockSpec((tm, 1), lambda i: (i, 0)),
            _const_spec((H, Lp)),
            _const_spec((1, Lp)),
        ],
        out_specs=pl.BlockSpec((tm, out_dim), lambda i: (i, 0)),
        compiler_params=pltpu.CompilerParams(
            dimension_semantics=("parallel",), vmem_limit_bytes=vmem_limit),
    )(x2d, mask2d, w, b)


# ---------------- fused linear + masked mean-pool (attr x item) --------------
def _fused_pool_kernel(attr_ref, item_ref, x_ref, w_ref, b_ref,
                       pooled_ref, counts_ref, *, A, I):
    # attr_ref/item_ref: (Bb, 1, T) i32 | x_ref: (Bb, T, H) bf16
    # w_ref: (H, Lp) bf16 | b_ref: (1, Lp) f32
    # pooled_ref: (Bb, A*I, Lp) f32 | counts_ref: (Bb, A*I, 1) f32
    Bb, T, H = x_ref.shape
    Lp = w_ref.shape[1]
    AI = A * I

    # Linear projection on the MXU (bf16 inputs, f32 accumulate); h stays in VMEM.
    x = x_ref[...].reshape(Bb * T, H)
    h = jnp.dot(x, w_ref[...], preferred_element_type=jnp.float32) + b_ref[...]
    h_bf = h.reshape(Bb, T, Lp).astype(jnp.bfloat16)

    # Bucket mask via iota + compare only (no int div/mod): a token with ids
    # (attr, item) lands on row r = (attr-1)*I + (item-1) iff 1<=attr<=A, 1<=item<=I.
    attr = attr_ref[...]
    item = item_ref[...]
    combined = (attr - 1) * I + (item - 1)                  # (Bb, 1, T)
    valid = (attr >= 1) & (attr <= A) & (item >= 1) & (item <= I)
    rows = jax.lax.broadcasted_iota(jnp.int32, (Bb, AI, T), 1)
    m = jnp.logical_and(combined == rows, valid).astype(jnp.bfloat16)  # 0/1 exact

    # Masked sum as a batched MXU matmul; counts accumulated in f32 from the
    # bf16 mask directly (no separate f32 mask copy).
    summed = jnp.einsum("bat,btl->bal", m, h_bf, preferred_element_type=jnp.float32)
    counts = jnp.sum(m, axis=-1, keepdims=True, dtype=jnp.float32)     # (Bb, AI, 1)

    inv = pl.reciprocal(jnp.maximum(counts, 1.0), approx=True)         # EUP slot
    pooled_ref[...] = summed * inv
    counts_ref[...] = counts        # one value per bucket (no 128x-replicated slab)


def _pick_bb(B, T, H, AI, Lp, budget):
    """Largest batch block that fits the VMEM budget, counting both the
    double-buffered pipeline blocks AND the in-kernel temporaries."""
    per_b = (2 * T * H * 2          # x block (bf16), double-buffered
             + 2 * 2 * T * 4        # attr + item id blocks (i32), double-buffered
             + 2 * AI * Lp * 4      # pooled output block (f32), double-buffered
             + 2 * AI * 4           # counts output block (f32), double-buffered
             + T * Lp * (4 + 2)     # h (f32) + bf16 copy of h
             + AI * T * (1 + 2)     # bool mask + bf16 mask
             + AI * Lp * 4)         # summed (f32) before the store
    fixed = H * Lp * 2 + Lp * 4     # single-buffered weights / bias
    bb = int(max(budget - fixed, per_b) // per_b)
    return max(1, min(bb, B))


def _plan_steps(B, bb):
    """Grid-step count; keep it even when >1 so v7x's 2 TensorCores stay balanced."""
    steps = _cdiv(B, bb)
    if steps > 1 and steps % 2 == 1:
        steps += 1
    return steps


def pallas_fused_pool(attr_ids, item_ids, hidden_bf16, w, b, A, I, *, budget, vmem_limit):
    """attr_ids/item_ids: (B,T) int, hidden_bf16: (B,T,H) bf16, w: (H,Lp) bf16,
    b: (1,Lp) f32.  Returns pooled (B, A*I, Lp) f32 and counts (B, A*I) f32."""
    B, T, H = hidden_bf16.shape
    Lp = w.shape[1]
    AI = A * I
    bb = _pick_bb(B, T, H, AI, Lp, budget)
    steps = _plan_steps(B, bb)
    B_pad = bb * steps
    attr2 = attr_ids.astype(jnp.int32)
    item2 = item_ids.astype(jnp.int32)
    if B_pad != B:   # padded rows have id 0 -> zero counts / pooled; sliced below
        hidden_bf16 = jnp.pad(hidden_bf16, ((0, B_pad - B), (0, 0), (0, 0)))
        attr2 = jnp.pad(attr2, ((0, B_pad - B), (0, 0)))
        item2 = jnp.pad(item2, ((0, B_pad - B), (0, 0)))
    attr3 = attr2.reshape(B_pad, 1, T)
    item3 = item2.reshape(B_pad, 1, T)
    # TODO(synk): for production-size H / very long T (esp. v7x's 64 MiB VMEM) add
    # H- and T-reduction grid axes ("arbitrary") with f32 VMEM scratch accumulators.
    pooled, counts = pl.pallas_call(
        functools.partial(_fused_pool_kernel, A=A, I=I),
        out_shape=(
            jax.ShapeDtypeStruct((B_pad, AI, Lp), jnp.float32),
            jax.ShapeDtypeStruct((B_pad, AI, 1), jnp.float32),
        ),
        grid=(steps,),
        in_specs=[
            pl.BlockSpec((bb, 1, T), lambda i: (i, 0, 0)),
            pl.BlockSpec((bb, 1, T), lambda i: (i, 0, 0)),
            pl.BlockSpec((bb, T, H), lambda i: (i, 0, 0)),
            _const_spec((H, Lp)),
            _const_spec((1, Lp)),
        ],
        out_specs=(
            pl.BlockSpec((bb, AI, Lp), lambda i: (i, 0, 0)),
            pl.BlockSpec((bb, AI, 1), lambda i: (i, 0, 0)),
        ),
        compiler_params=pltpu.CompilerParams(
            dimension_semantics=("parallel",), vmem_limit_bytes=vmem_limit),
    )(attr3, item3, hidden_bf16, w, b)
    if B_pad != B:
        pooled, counts = pooled[:B], counts[:B]
    return pooled, counts[..., 0]


# ------------------------------- module --------------------------------------
class MARSPoolerPallas:
    def __init__(self, hidden_size, linear_dim, pooler_type, pad_token_id=1,
                 max_attr_num=8, max_item_num=16, seed=0):
        assert pooler_type in ["cls", "token", "item", "attribute"]
        self.pooler_type = pooler_type
        self.pad_token_id = pad_token_id
        self.H = hidden_size
        self.L = linear_dim
        # Lane-dense MXU N.  Note: with Lp=128 only half of the 256-wide MXU N is
        # used on v6e/v7x; if linear_dim is in (128, 256] the round-up to 256 is
        # the right choice anyway.
        self.Lp = _round_up(linear_dim, 128)
        self.A_MAX = max_attr_num      # static pads -> kernels compile once
        self.I_MAX = max_item_num
        self.budget, self.vmem_limit = _vmem_plan()
        # deterministic init, matching nn.Linear shapes: weight (L, H), bias (L,)
        k = jax.random.PRNGKey(seed)
        kw, kb = jax.random.split(k)
        bound = 1.0 / (hidden_size ** 0.5)
        w = jax.random.uniform(kw, (linear_dim, hidden_size), jnp.float32, -bound, bound)
        b = jax.random.uniform(kb, (linear_dim,), jnp.float32, -bound, bound)
        w_t = jnp.pad(jnp.transpose(w), ((0, 0), (0, self.Lp - linear_dim)))
        self.w = w_t.astype(jnp.bfloat16)                                   # (H, Lp)
        self.b = jnp.pad(b, (0, self.Lp - linear_dim)).reshape(1, self.Lp)  # (1, Lp) f32

    def _dynamic_extents(self, attr_type_ids, item_position_ids):
        # Single device->host readback for BOTH data-dependent extents; needed only
        # to slice the dynamic output shape (mirrors PyTorch's dynamic shapes).
        num_items = jnp.where(item_position_ids == 50, -100, item_position_ids)
        stats = jnp.stack([jnp.max(attr_type_ids), jnp.max(num_items)]).astype(jnp.int32)
        a, i = (int(v) for v in jax.device_get(stats))
        return max(a, 0), max(i, 0)

    def __call__(self, attention_mask, hidden_states, attr_type_ids, item_position_ids):
        B, T, _ = hidden_states.shape
        L, Lp = self.L, self.Lp
        # Kernels read bf16; ideally the upstream model already emits bf16 so this
        # cast (one extra XLA pass) disappears entirely.
        hs = hidden_states if hidden_states.dtype == jnp.bfloat16 \
            else hidden_states.astype(jnp.bfloat16)

        if self.pooler_type == "attribute":
            attr_max, items_max = self._dynamic_extents(attr_type_ids, item_position_ids)
            if attr_max > self.A_MAX or items_max > self.I_MAX:
                raise ValueError("attr/item ids exceed static A_MAX/I_MAX pads")
            pooled, counts = pallas_fused_pool(
                attr_type_ids, item_position_ids, hs, self.w, self.b,
                self.A_MAX, self.I_MAX, budget=self.budget, vmem_limit=self.vmem_limit)
            pooled = pooled.reshape(B, self.A_MAX, self.I_MAX, Lp)
            counts = counts.reshape(B, self.A_MAX, self.I_MAX)
            pooled = pooled[:, :attr_max, :items_max, :L]
            counts = counts[:, :attr_max, :items_max]
            return pooled, counts == 0

        elif self.pooler_type == "item":
            _, items_max = self._dynamic_extents(attr_type_ids, item_position_ids)
            if items_max > self.I_MAX:
                raise ValueError("item ids exceed static I_MAX pad")
            fake_attr = jnp.ones_like(item_position_ids)   # A=1 -> item-only buckets
            pooled, counts = pallas_fused_pool(
                fake_attr, item_position_ids, hs, self.w, self.b,
                1, self.I_MAX, budget=self.budget, vmem_limit=self.vmem_limit)
            pooled = pooled.reshape(B, 1, self.I_MAX, Lp)[:, :, :items_max, :L]
            counts = counts.reshape(B, 1, self.I_MAX)[:, :, :items_max]
            return pooled, counts == 0

        elif self.pooler_type == "token":
            mask = attention_mask[..., :T]
            # fused: linear + [:, :L] slice + attention-mask->NaN on flat (B*T, H)
            h = pallas_linear_masked(
                hs.reshape(B * T, self.H), mask.reshape(B * T), self.w, self.b, L,
                budget=self.budget, vmem_limit=self.vmem_limit)
            pooled = h.reshape(B, T, L)[:, None]            # (B, 1, T, L); free reshape
            return pooled, mask.astype(bool)

        elif self.pooler_type == "cls":
            ones = jnp.ones((B,), jnp.int32)                # no masking for cls
            h0 = pallas_linear_masked(hs[:, 0, :], ones, self.w, self.b, L,
                                      budget=self.budget, vmem_limit=self.vmem_limit)
            pooled = h0[:, None, None, :]                   # (B, 1, 1, L)
            return pooled, jnp.zeros(pooled.shape[:-1], dtype=bool)

        else:
            raise ValueError(f"pooler_type {self.pooler_type} is not supported")


# --------------------------- pure-JAX reference -------------------------------
def _ref_linear(pooler, x):
    w = pooler.w.astype(jnp.float32)[:, :pooler.L]
    b = pooler.b[0, :pooler.L]
    return x @ w + b


def _ref_pool(h, attr, item, A, I):
    a_ids = jnp.arange(1, A + 1)
    i_ids = jnp.arange(1, I + 1)
    am = attr[:, None, :] == a_ids[None, :, None]                    # (B, A, T)
    im = item[:, None, :] == i_ids[None, :, None]                    # (B, I, T)
    m = (am[:, :, None, :] & im[:, None, :, :]).astype(jnp.float32)  # (B, A, I, T)
    summed = jnp.einsum("bait,btl->bail", m, h)
    counts = m.sum(-1)
    pooled = summed / jnp.maximum(counts, 1.0)[..., None]
    return pooled, counts


# -------------------------------- demo ---------------------------------------
if __name__ == "__main__":
    B, T, H, L = 2, 64, 32, 64
    key = jax.random.PRNGKey(0)
    k1, k2, k3, k4 = jax.random.split(key, 4)

    hidden_states = jax.random.normal(k1, (B, T, H), jnp.float32)
    attention_mask = (jax.random.uniform(k2, (B, T)) > 0.2).astype(jnp.int32)
    attr_type_ids = jax.random.randint(k3, (B, T), 0, 4).astype(jnp.int32)      # 0..3
    item_position_ids = jax.random.randint(k4, (B, T), 0, 6).astype(jnp.int32)  # 0..5
    item_position_ids = item_position_ids.at[:, -2:].set(50)   # sentinel tokens
    attr_type_ids = attr_type_ids.at[:, 1].set(1)              # at least one valid pos
    item_position_ids = item_position_ids.at[:, 1].set(1)

    ok = True
    for ptype in ["attribute", "item", "cls", "token"]:
        pooler = MARSPoolerPallas(H, L, ptype, seed=0)
        pooled, mask = pooler(attention_mask, hidden_states,
                              attr_type_ids, item_position_ids)
        pooled = jax.block_until_ready(pooled)
        mask = jax.block_until_ready(mask)

        # numerical sanity check against a pure-JAX f32 reference
        h_ref = _ref_linear(pooler, hidden_states)             # (B, T, L)
        if ptype in ("attribute", "item"):
            attr = attr_type_ids if ptype == "attribute" else jnp.ones_like(attr_type_ids)
            A_dyn, I_dyn = pooled.shape[1], pooled.shape[2]
            ref_p, ref_c = _ref_pool(h_ref, attr, item_position_ids, A_dyn, I_dyn)
            err = float(jnp.max(jnp.abs(pooled - ref_p)))
            ok &= (err < 5e-2) and bool(jnp.all(mask == (ref_c == 0)))
        elif ptype == "cls":
            err = float(jnp.max(jnp.abs(pooled[:, 0, 0, :] - h_ref[:, 0, :])))
            ok &= err < 5e-2
        else:  # token
            m = attention_mask[..., :T].astype(bool)
            got = jnp.where(m[..., None], pooled[:, 0], 0.0)
            ref = jnp.where(m[..., None], h_ref, 0.0)
            err = float(jnp.max(jnp.abs(got - ref)))
            nan_ok = bool(jnp.all(jnp.isnan(pooled[:, 0]) == (~m)[..., None]))
            ok &= (err < 5e-2) and nan_ok

    if not ok:
        raise AssertionError("numerical check against pure-JAX reference failed")
    print("KERNEL_OK")
</pallas_src>

<mosaic_0001>
module attributes {stable_mosaic.version = 11 : i64} {
  func.func @_fused_pool_kernel(%arg0: i32, %arg1: memref<2x1x64xi32, #tpu.memory_space<vmem>>, %arg2: memref<2x1x64xi32, #tpu.memory_space<vmem>>, %arg3: memref<2x64x32xbf16, #tpu.memory_space<vmem>>, %arg4: memref<32x128xbf16, #tpu.memory_space<vmem>>, %arg5: memref<1x128xf32, #tpu.memory_space<vmem>>, %arg6: memref<2x128x128xf32, #tpu.memory_space<vmem>>, %arg7: memref<2x128x1xf32, #tpu.memory_space<vmem>>) attributes {dimension_semantics = [#tpu.dimension_semantics<parallel>], iteration_bounds = array<i64: 1>, scalar_prefetch = 0 : i64, scratch_operands = 0 : i64, tpu.core_type = #tpu.core_type<tc>, window_params = [{transform_indices = @transform_0, window_bounds = array<i64: 2, 1, 64>}, {transform_indices = @transform_1, window_bounds = array<i64: 2, 1, 64>}, {transform_indices = @transform_2, window_bounds = array<i64: 2, 64, 32>}, {pipeline_mode = #tpu.pipeline_mode<synchronous>, transform_indices = @transform_3, window_bounds = array<i64: 32, 128>}, {pipeline_mode = #tpu.pipeline_mode<synchronous>, transform_indices = @transform_4, window_bounds = array<i64: 1, 128>}, {transform_indices = @transform_5, window_bounds = array<i64: 2, 128, 128>}, {transform_indices = @transform_6, window_bounds = array<i64: 2, 128, 1>}]} {
    %c0 = arith.constant 0 : index
    %c0_0 = arith.constant 0 : index
    %c0_1 = arith.constant 0 : index
    %0 = vector.load %arg3[%c0, %c0_0, %c0_1] : memref<2x64x32xbf16, #tpu.memory_space<vmem>>, vector<2x64x32xbf16>
    %1 = vector.shape_cast %0 : vector<2x64x32xbf16> to vector<128x32xbf16>
    %c0_2 = arith.constant 0 : index
    %c0_3 = arith.constant 0 : index
    %2 = vector.load %arg4[%c0_2, %c0_3] : memref<32x128xbf16, #tpu.memory_space<vmem>>, vector<32x128xbf16>
    %cst = arith.constant dense<0.000000e+00> : vector<128x128xf32>
    %3 = tpu.matmul %1, %2, %cst {dimension_numbers = #tpu.dot_dimension_numbers<[1], [0], [0], [1], [0, 0, 1, 1], [], []>} : vector<128x32xbf16>, vector<32x128xbf16>, vector<128x128xf32> -> vector<128x128xf32>
    %c0_4 = arith.constant 0 : index
    %c0_5 = arith.constant 0 : index
    %4 = vector.load %arg5[%c0_4, %c0_5] : memref<1x128xf32, #tpu.memory_space<vmem>>, vector<1x128xf32>
    %5 = vector.broadcast %4 : vector<1x128xf32> to vector<128x128xf32>
    %6 = arith.addf %3, %5 : vector<128x128xf32>
    %7 = vector.shape_cast %6 : vector<128x128xf32> to vector<2x64x128xf32>
    %8 = arith.truncf %7 : vector<2x64x128xf32> to vector<2x64x128xbf16>
    %c0_6 = arith.constant 0 : index
    %c0_7 = arith.constant 0 : index
    %c0_8 = arith.constant 0 : index
    %9 = vector.load %arg1[%c0_6, %c0_7, %c0_8] : memref<2x1x64xi32, #tpu.memory_space<vmem>>, vector<2x1x64xi32>
    %c0_9 = arith.constant 0 : index
    %c0_10 = arith.constant 0 : index
    %c0_11 = arith.constant 0 : index
    %10 = vector.load %arg2[%c0_9, %c0_10, %c0_11] : memref<2x1x64xi32, #tpu.memory_space<vmem>>, vector<2x1x64xi32>
    %c1_i32 = arith.constant 1 : i32
    %11 = vector.broadcast %c1_i32 : i32 to vector<2x1x64xi32>
    %12 = arith.subi %9, %11 : vector<2x1x64xi32>
    %c16_i32 = arith.constant 16 : i32
    %13 = vector.broadcast %c16_i32 : i32 to vector<2x1x64xi32>
    %14 = arith.muli %12, %13 : vector<2x1x64xi32>
    %c1_i32_12 = arith.constant 1 : i32
    %15 = vector.broadcast %c1_i32_12 : i32 to vector<2x1x64xi32>
    %16 = arith.subi %10, %15 : vector<2x1x64xi32>
    %17 = arith.addi %14, %16 : vector<2x1x64xi32>
    %c1_i32_13 = arith.constant 1 : i32
    %18 = vector.broadcast %c1_i32_13 : i32 to vector<2x1x64xi32>
    %19 = arith.cmpi sge, %9, %18 : vector<2x1x64xi32>
    %c8_i32 = arith.constant 8 : i32
    %20 = vector.broadcast %c8_i32 : i32 to vector<2x1x64xi32>
    %21 = arith.cmpi sle, %9, %20 : vector<2x1x64xi32>
    %22 = arith.andi %19, %21 : vector<2x1x64xi1>
    %c1_i32_14 = arith.constant 1 : i32
    %23 = vector.broadcast %c1_i32_14 : i32 to vector<2x1x64xi32>
    %24 = arith.cmpi sge, %10, %23 : vector<2x1x64xi32>
    %25 = arith.andi %22, %24 : vector<2x1x64xi1>
    %c16_i32_15 = arith.constant 16 : i32
    %26 = vector.broadcast %c16_i32_15 : i32 to vector<2x1x64xi32>
    %27 = arith.cmpi sle, %10, %26 : vector<2x1x64xi32>
    %28 = arith.andi %25, %27 : vector<2x1x64xi1>
    %29 = tpu.iota {dimensions = array<i32: 1>} : vector<2x128x64xi32>
    %30 = vector.broadcast %17 : vector<2x1x64xi32> to vector<2x128x64xi32>
    %31 = arith.cmpi eq, %30, %29 : vector<2x128x64xi32>
    %32 = vector.broadcast %28 : vector<2x1x64xi1> to vector<2x128x64xi1>
    %33 = arith.andi %31, %32 : vector<2x128x64xi1>
    %34 = arith.extui %33 : vector<2x128x64xi1> to vector<2x128x64xi32>
    %35 = arith.sitofp %34 : vector<2x128x64xi32> to vector<2x128x64xf32>
    %36 = arith.truncf %35 : vector<2x128x64xf32> to vector<2x128x64xbf16>
    "tpu.trace_start"() <{level = 10 : i32, message = "bat,btl->bal"}> : () -> ()
    %cst_16 = arith.constant dense<0.000000e+00> : vector<2x128x128xf32>
    %37 = tpu.matmul %36, %8, %cst_16 {dimension_numbers = #tpu.dot_dimension_numbers<[2], [1], [1], [2], [0, 0, 0, 1, 1, 2], [0], [0]>} : vector<2x128x64xbf16>, vector<2x64x128xbf16>, vector<2x128x128xf32> -> vector<2x128x128xf32>
    "tpu.trace_stop"() : () -> ()
    %38 = arith.extf %36 : vector<2x128x64xbf16> to vector<2x128x64xf32>
    %cst_17 = arith.constant dense<0.000000e+00> : vector<2x128xf32>
    %39 = vector.multi_reduction <add>, %38, %cst_17 [2] : vector<2x128x64xf32> to vector<2x128xf32>
    %40 = vector.shape_cast %39 : vector<2x128xf32> to vector<2x128x1xf32>
    %cst_18 = arith.constant 1.000000e+00 : f32
    %41 = vector.broadcast %cst_18 : f32 to vector<2x128x1xf32>
    %42 = arith.maximumf %40, %41 : vector<2x128x1xf32>
    %43 = tpu.reciprocal %42 {approx = true} : vector<2x128x1xf32> -> vector<2x128x1xf32>
    %44 = vector.broadcast %43 : vector<2x128x1xf32> to vector<2x128x128xf32>
    %45 = arith.mulf %37, %44 : vector<2x128x128xf32>
    %c0_19 = arith.constant 0 : index
    %c0_20 = arith.constant 0 : index
    %c0_21 = arith.constant 0 : index
    %46 = vector.load %arg6[%c0_19, %c0_20, %c0_21] : memref<2x128x128xf32, #tpu.memory_space<vmem>>, vector<2x128x128xf32>
    tpu.vector_store %arg6[%c0_19, %c0_20, %c0_21], %45 {strides = array<i32>} : memref<2x128x128xf32, #tpu.memory_space<vmem>>, vector<2x128x128xf32>,
    %c0_22 = arith.constant 0 : index
    %c0_23 = arith.constant 0 : index
    %c0_24 = arith.constant 0 : index
    %47 = vector.load %arg7[%c0_22, %c0_23, %c0_24] : memref<2x128x1xf32, #tpu.memory_space<vmem>>, vector<2x128x1xf32>
    tpu.vector_store %arg7[%c0_22, %c0_23, %c0_24], %40 {strides = array<i32>} : memref<2x128x1xf32, #tpu.memory_space<vmem>>, vector<2x128x1xf32>,
    return
  }
  func.func @transform_0(%arg0: i32) -> (i32, i32, i32) {
    %c0_i32 = arith.constant 0 : i32
    %c0_i32_0 = arith.constant 0 : i32
    %c0_i32_1 = arith.constant 0 : i32
    return %arg0, %c0_i32, %c0_i32_0 : i32, i32, i32
  }
  func.func @transform_1(%arg0: i32) -> (i32, i32, i32) {
    %c0_i32 = arith.constant 0 : i32
    %c0_i32_0 = arith.constant 0 : i32
    %c0_i32_1 = arith.constant 0 : i32
    return %arg0, %c0_i32, %c0_i32_0 : i32, i32, i32
  }
  func.func @transform_2(%arg0: i32) -> (i32, i32, i32) {
    %c0_i32 = arith.constant 0 : i32
    %c0_i32_0 = arith.constant 0 : i32
    %c0_i32_1 = arith.constant 0 : i32
    return %arg0, %c0_i32, %c0_i32_0 : i32, i32, i32
  }
  func.func @transform_3(%arg0: i32) -> (i32, i32) {
    %c0_i32 = arith.constant 0 : i32
    %c0_i32_0 = arith.constant 0 : i32
    %c0_i32_1 = arith.constant 0 : i32
    return %c0_i32, %c0_i32_0 : i32, i32
  }
  func.func @transform_4(%arg0: i32) -> (i32, i32) {
    %c0_i32 = arith.constant 0 : i32
    %c0_i32_0 = arith.constant 0 : i32
    %c0_i32_1 = arith.constant 0 : i32
    return %c0_i32, %c0_i32_0 : i32, i32
  }
  func.func @transform_5(%arg0: i32) -> (i32, i32, i32) {
    %c0_i32 = arith.constant 0 : i32
    %c0_i32_0 = arith.constant 0 : i32
    %c0_i32_1 = arith.constant 0 : i32
    return %arg0, %c0_i32, %c0_i32_0 : i32, i32, i32
  }
  func.func @transform_6(%arg0: i32) -> (i32, i32, i32) {
    %c0_i32 = arith.constant 0 : i32
    %c0_i32_0 = arith.constant 0 : i32
    %c0_i32_1 = arith.constant 0 : i32
    return %arg0, %c0_i32, %c0_i32_0 : i32, i32, i32
  }
}

</mosaic_0001>

<llo_original>
// kernel: tpu_custom_call.1
$region0: #{tpu_custom_call.1}
  #allocation0 [shape = 'u32[]', space=smem, size = 0x4, offset = 0x4, fixed_abs, tag = 'smem constant byte address 0x4 - core index']
  #allocation1 [shape = 'u32[144,128]{1,0:T(1,128)}', space=vmem, size = 0x12000, scoped, tag = 'internal scratch']
  %s0 = inlined_call_operand.vmem [shape: s32[2,1,64], index: 0, kind: input, shape index: {}]
  %s1 = inlined_call_operand.vmem [shape: s32[2,1,64], index: 1, kind: input, shape index: {}]
  %s2 = inlined_call_operand.vmem [shape: bf16[2,64,32], index: 2, kind: input, shape index: {}]
  %s3 = inlined_call_operand.vmem [shape: bf16[32,128], index: 3, kind: input, shape index: {}]
  %s4 = inlined_call_operand.vmem [shape: f32[1,128], index: 4, kind: input, shape index: {}]
  %s5 = inlined_call_operand.hbm [shape: f32[2,128,128], index: 5, kind: output, shape index: {0}]
  %s6 = inlined_call_operand.vmem [shape: f32[2,128,1], index: 6, kind: output, shape index: {1}]
  %7 = xla_tuple %s5, %s6
  %s8 = sld [smem:[#allocation0]]
  $region38: #{tpu_custom_call.1} parent=0
    _
  %s10 = ssub.s32 1, %s8
  %s11 = scalar_select 0, %s10, %s8
  $region1: #{tpu_custom_call.1} parent=0
    #allocation2 [shape = 'u8[131072]{0}', space=vmem, size = 0x20000, scoped, tag = 'output window, operand 0, single buffered']
    #allocation3 [shape = 's32[1]{0}', space=sflag, size = 0x4, scoped, tag = 'scoped memory for tpu_custom_call.1']
    %12 = vsyncpa [#allocation3], 0
    // Predicated region
    $region2: #{tpu_custom_call.1} parent=1 // pred_check
      _
    $region3: #{tpu_custom_call.1} parent=1 // pred_check_branch
      %14 = sbr.rel (0) target = $region5
    $region4: #{tpu_custom_call.1} parent=1 // pred_region
      _
    $region5: #{tpu_custom_call.1} parent=1 // pred_fallthru
      _
    // Predicated region
    $region6: #{tpu_custom_call.1} parent=1 // pred_check
      _
    $region7: #{tpu_custom_call.1} parent=1 // pred_check_branch
      %16 = sbr.rel (0) target = $region9
    $region8: #{tpu_custom_call.1} parent=1 // pred_region
      _
    $region9: #{tpu_custom_call.1} parent=1 // pred_fallthru
      _
    // Predicated region
    $region10: #{tpu_custom_call.1} parent=1 // pred_check
      _
    $region11: #{tpu_custom_call.1} parent=1 // pred_check_branch
      %18 = sbr.rel (0) target = $region13
    $region12: #{tpu_custom_call.1} parent=1 // pred_region
      _
    $region13: #{tpu_custom_call.1} parent=1 // pred_fallthru
      _
    // Predicated region
    $region14: #{tpu_custom_call.1} parent=1 // pred_check
      _
    $region15: #{tpu_custom_call.1} parent=1 // pred_check_branch
      %20 = sbr.rel (0) target = $region17
    $region16: #{tpu_custom_call.1} parent=1 // pred_region
      _
    $region17: #{tpu_custom_call.1} parent=1 // pred_fallthru
      _
    // Predicated region
    $region18: #{tpu_custom_call.1} parent=1 // pred_check
      _
    $region19: #{tpu_custom_call.1} parent=1 // pred_check_branch
      %22 = sbr.rel (0) target = $region21
    $region20: #{tpu_custom_call.1} parent=1 // pred_region
      _
    $region21: #{tpu_custom_call.1} parent=1 // pred_fallthru
      _
    %v24 = vld [vmem:[%s2] sm:$0xf]
    %v25 = vld [vmem:[%s2 + $0x4] sm:$0xf]
    %v26 = vld [vmem:[%s2 + $0x8] sm:$0xf]
    %v27 = vld [vmem:[%s2 + $0xc] sm:$0xf]
    %v28 = vld [vmem:[%s2 + $0x10] sm:$0xf]
    %v29 = vld [vmem:[%s2 + $0x14] sm:$0xf]
    %v30 = vld [vmem:[%s2 + $0x18] sm:$0xf]
    %v31 = vld [vmem:[%s2 + $0x1c] sm:$0xf]
    %v32 = vld [vmem:[%s2 + $0x20] sm:$0xf]
    %v33 = vld [vmem:[%s2 + $0x24] sm:$0xf]
    %v34 = vld [vmem:[%s2 + $0x28] sm:$0xf]
    %v35 = vld [vmem:[%s2 + $0x2c] sm:$0xf]
    %v36 = vld [vmem:[%s2 + $0x30] sm:$0xf]
    %v37 = vld [vmem:[%s2 + $0x34] sm:$0xf]
    %v38 = vld [vmem:[%s2 + $0x38] sm:$0xf]
    %v39 = vld [vmem:[%s2 + $0x3c] sm:$0xf]
    %v40 = vld [vmem:[%s3] sm:$0xf]
    %v41 = vld [vmem:[%s3 + $0x4] sm:$0xf]
    %v42 = vld [vmem:[%s3 + $0x8] sm:$0xf]
    %v43 = vld [vmem:[%s3 + $0xc] sm:$0xf]
    %v44 = vld [vmem:[%s4] sm:$0x1]
    %v46 = vlaneseq
    %v47 = vshrl.u32 %v46, 7
    %v48 = vsub.s32 0, %v47
    %v49 = vrot.slane %v44, %v48
    %v67 = vunpack.c.l.b16 %v24
    %v68 = vunpack.c.l.b16 %v25
    %v69 = vunpack.c.l.b16 %v26
    %v70 = vunpack.c.l.b16 %v27
    %v71 = vunpack.c.l.b16 %v28
    %v72 = vunpack.c.l.b16 %v29
    %v73 = vunpack.c.l.b16 %v30
    %v74 = vunpack.c.l.b16 %v31
    %v75 = vunpack.c.l.b16 %v32
    %v76 = vunpack.c.l.b16 %v33
    %v77 = vunpack.c.l.b16 %v34
    %v78 = vunpack.c.l.b16 %v35
    %v79 = vunpack.c.l.b16 %v36
    %v80 = vunpack.c.l.b16 %v37
    %v81 = vunpack.c.l.b16 %v38
    %v82 = vunpack.c.l.b16 %v39
    %v83 = vpack.c.b16 %v68, %v67
    %v84 = vpack.c.b16 %v70, %v69
    %v85 = vpack.c.b16 %v72, %v71
    %v86 = vpack.c.b16 %v74, %v73
    %v87 = vpack.c.b16 %v76, %v75
    %v88 = vpack.c.b16 %v78, %v77
    %v89 = vpack.c.b16 %v80, %v79
    %v90 = vpack.c.b16 %v82, %v81
    %v95 = vunpack.c.l.b16 %v40
    %v96 = vunpack.c.l.b16 %v41
    %v97 = vunpack.c.l.b16 %v42
    %v98 = vunpack.c.l.b16 %v43
    %v99 = vpack.c.b16 %v96, %v95
    %v100 = vpack.c.b16 %v98, %v97
    %vm103 = vcmask 261120
    %v105 = vsel %vm103, %v83, 0
    %v108 = vsel %vm103, %v84, 0
    %v111 = vsel %vm103, %v85, 0
    %v114 = vsel %vm103, %v86, 0
    %v117 = vsel %vm103, %v87, 0
    %v120 = vsel %vm103, %v88, 0
    %v123 = vsel %vm103, %v89, 0
    %v126 = vsel %vm103, %v90, 0
    %128 = vmatprep.subr.bf16.mxu0 0
    %129 = vmatpush1.bf16.msra.mxu0 %v99
    %130 = vmatprep.subr.bf16.mxu0 0
    %131 = vmatpush1.bf16.msra.mxu0 %v100
    %132 = vmatprep.subr.bf16.mxu0 0
    %133 = vmatpush1.bf16.msra.mxu0 0
    %134 = vmatprep.subr.bf16.mxu0 0
    %135 = vmatpush1.bf16.msra.mxu0 0
    %136 = vmatprep.subr.bf16.mxu0 0
    %137 = vmatpush1.bf16.msra.mxu0 0
    %138 = vmatprep.subr.bf16.mxu0 0
    %139 = vmatpush1.bf16.msra.mxu0 0
    %140 = vmatprep.subr.bf16.mxu0 0
    %141 = vmatpush1.bf16.msra.mxu0 0
    %142 = vmatprep.subr.bf16.mxu0 0
    %143 = vmatpush1.bf16.msra.mxu0 0
    %144 = vmatprep.subr.bf16.mxu0 0
    %145 = vmatpush1.bf16.msra.mxu0 0
    %146 = vmatprep.subr.bf16.mxu0 0
    %147 = vmatpush1.bf16.msra.mxu0 0
    %148 = vmatprep.subr.bf16.mxu0 0
    %149 = vmatpush1.bf16.msra.mxu0 0
    %150 = vmatprep.subr.bf16.mxu0 0
    %151 = vmatpush1.bf16.msra.mxu0 0
    %152 = vmatprep.subr.bf16.mxu0 0
    %153 = vmatpush1.bf16.msra.mxu0 0
    %154 = vmatprep.subr.bf16.mxu0 0
    %155 = vmatpush1.bf16.msra.mxu0 0
    %156 = vmatprep.subr.bf16.mxu0 0
    %157 = vmatpush1.bf16.msra.mxu0 0
    %158 = vmatprep.subr.bf16.mxu0 0
    %159 = vmatpush1.bf16.msra.mxu0 0
    %160 = vmatprep.mubr.bf16.mxu0 0
    %161 = vmatmul.mubr.bf16.gmra.mrb[0].mxu0 %v105
    %v162 = vpop.f32.mrb[0].mxu0
    %v163 = vadd.f32 %v49, %v162
    %v164 = vpop.f32.mrb[0].mxu0
    %v165 = vpop.f32.mrb[0].mxu0
    %v166 = vadd.f32 %v49, %v165
    %v167 = vpop.f32.mrb[0].mxu0
    %168 = vmatprep.mubr.bf16.mxu0 0
    %169 = vmatmul.mubr.bf16.gmra.mrb[0].mxu0 %v108
    %v170 = vpop.f32.mrb[0].mxu0
    %v171 = vadd.f32 %v49, %v170
    %v172 = vpop.f32.mrb[0].mxu0
    %v173 = vpop.f32.mrb[0].mxu0
    %v174 = vadd.f32 %v49, %v173
    %v175 = vpop.f32.mrb[0].mxu0
    %176 = vmatprep.mubr.bf16.mxu0 0
    %177 = vmatmul.mubr.bf16.gmra.mrb[0].mxu0 %v111
    %v178 = vpop.f32.mrb[0].mxu0
    %v179 = vadd.f32 %v49, %v178
    %v180 = vpop.f32.mrb[0].mxu0
    %v181 = vpop.f32.mrb[0].mxu0
    %v182 = vadd.f32 %v49, %v181
    %v183 = vpop.f32.mrb[0].mxu0
    %184 = vmatprep.mubr.bf16.mxu0 0
    %185 = vmatmul.mubr.bf16.gmra.mrb[0].mxu0 %v114
    %v186 = vpop.f32.mrb[0].mxu0
    %v187 = vadd.f32 %v49, %v186
    %v188 = vpop.f32.mrb[0].mxu0
    %v189 = vpop.f32.mrb[0].mxu0
    %v190 = vadd.f32 %v49, %v189
    %v191 = vpop.f32.mrb[0].mxu0
    %192 = vmatprep.mubr.bf16.mxu0 0
    %193 = vmatmul.mubr.bf16.gmra.mrb[0].mxu0 %v117
    %v194 = vpop.f32.mrb[0].mxu0
    %v195 = vadd.f32 %v49, %v194
    %v196 = vpop.f32.mrb[0].mxu0
    %v197 = vpop.f32.mrb[0].mxu0
    %v198 = vadd.f32 %v49, %v197
    %v199 = vpop.f32.mrb[0].mxu0
    %200 = vmatprep.mubr.bf16.mxu0 0
    %201 = vmatmul.mubr.bf16.gmra.mrb[0].mxu0 %v120
    %v202 = vpop.f32.mrb[0].mxu0
    %v203 = vadd.f32 %v49, %v202
    %v204 = vpop.f32.mrb[0].mxu0
    %v205 = vpop.f32.mrb[0].mxu0
    %v206 = vadd.f32 %v49, %v205
    %v207 = vpop.f32.mrb[0].mxu0
    %208 = vmatprep.mubr.bf16.mxu0 0
    %209 = vmatmul.mubr.bf16.gmra.mrb[0].mxu0 %v123
    %v210 = vpop.f32.mrb[0].mxu0
    %v211 = vadd.f32 %v49, %v210
    %v212 = vpop.f32.mrb[0].mxu0
    %v213 = vpop.f32.mrb[0].mxu0
    %v214 = vadd.f32 %v49, %v213
    %v215 = vpop.f32.mrb[0].mxu0
    %216 = vmatprep.mubr.bf16.mxu0 0
    %217 = vmatmul.mubr.bf16.gmra.mrb[0].mxu0 %v126
    %v218 = vpop.f32.mrb[0].mxu0
    %v219 = vadd.f32 %v49, %v218
    %v220 = vpop.f32.mrb[0].mxu0
    %v221 = vpop.f32.mrb[0].mxu0
    %v222 = vadd.f32 %v49, %v221
    %v223 = vpop.f32.mrb[0].mxu0
    %224 = vdwg.mxu0
    %v225 = vpack.c.bf16 %v166, %v163
    %v226 = vpack.c.bf16 %v174, %v171
    %v227 = vpack.c.bf16 %v182, %v179
    %v228 = vpack.c.bf16 %v190, %v187
    %v229 = vpack.c.bf16 %v198, %v195
    %v230 = vpack.c.bf16 %v206, %v203
    %v231 = vpack.c.bf16 %v214, %v211
    %v232 = vpack.c.bf16 %v222, %v219
    %v233 = vld [vmem:[%s0] sm:$0x1]
    %v234 = vld [vmem:[%s0 + $0x1] sm:$0x1]
    %v235 = vld [vmem:[%s1] sm:$0x1]
    %v236 = vld [vmem:[%s1 + $0x1] sm:$0x1]
    %v237 = vsub.s32 %v233, 1
    %v238 = vsub.s32 %v234, 1
    %v239 = vmul.u32 %v237, 16
    %v240 = vmul.u32 %v238, 16
    %v241 = vsub.s32 %v235, 1
    %v242 = vsub.s32 %v236, 1
    %v243 = vadd.s32 %v239, %v241
    %v244 = vadd.s32 %v240, %v242
    %vm245 = vcmp.ge.s32.totalorder %v233, 1
    %vm246 = vcmp.ge.s32.totalorder %v234, 1
    %vm247 = vcmp.le.s32.totalorder %v233, 8
    %vm248 = vcmp.le.s32.totalorder %v234, 8
    %vm249 = vmand %vm245, %vm247
    %vm250 = vmand %vm246, %vm248
    %vm251 = vcmp.ge.s32.totalorder %v235, 1
    %vm252 = vcmp.ge.s32.totalorder %v236, 1
    %vm253 = vmand %vm249, %vm251
    %vm254 = vmand %vm250, %vm252
    %vm255 = vcmp.le.s32.totalorder %v235, 16
    %vm256 = vcmp.le.s32.totalorder %v236, 16
    %vm257 = vmand %vm253, %vm255
    %vm258 = vmand %vm254, %vm256
    %v259 = vlaneseq
    %v260 = vshrl.u32 %v259, 7
    %v261 = vadd.s32 %v260, 8
    %v262 = vadd.s32 %v260, 16
    %v263 = vadd.s32 %v260, 24
    %v264 = vadd.s32 %v260, 32
    %v265 = vadd.s32 %v260, 40
    %v266 = vadd.s32 %v260, 48
    %v267 = vadd.s32 %v260, 56
    %v268 = vadd.s32 %v260, 64
    %v269 = vadd.s32 %v260, 72
    %v270 = vadd.s32 %v260, 80
    %v271 = vadd.s32 %v260, 88
    %v272 = vadd.s32 %v260, 96
    %v273 = vadd.s32 %v260, 104
    %v274 = vadd.s32 %v260, 112
    %v275 = vadd.s32 %v260, 120
    %v276 = vlaneseq
    %v277 = vshrl.u32 %v276, 7
    %v278 = vsub.s32 0, %v277
    %v279 = vrot.slane %v243, %v278
    %v280 = vlaneseq
    %v281 = vshrl.u32 %v280, 7
    %v282 = vsub.s32 0, %v281
    %v283 = vrot.slane %v244, %v282
    %vm284 = vcmp.eq.s32.totalorder %v279, %v260
    %vm285 = vcmp.eq.s32.totalorder %v279, %v261
    %vm286 = vcmp.eq.s32.totalorder %v279, %v262
    %vm287 = vcmp.eq.s32.totalorder %v279, %v263
    %vm288 = vcmp.eq.s32.totalorder %v279, %v264
    %vm289 = vcmp.eq.s32.totalorder %v279, %v265
    %vm290 = vcmp.eq.s32.totalorder %v279, %v266
    %vm291 = vcmp.eq.s32.totalorder %v279, %v267
    %vm292 = vcmp.eq.s32.totalorder %v279, %v268
    %vm293 = vcmp.eq.s32.totalorder %v279, %v269
    %vm294 = vcmp.eq.s32.totalorder %v279, %v270
    %vm295 = vcmp.eq.s32.totalorder %v279, %v271
    %vm296 = vcmp.eq.s32.totalorder %v279, %v272
    %vm297 = vcmp.eq.s32.totalorder %v279, %v273
    %vm298 = vcmp.eq.s32.totalorder %v279, %v274
    %vm299 = vcmp.eq.s32.totalorder %v279, %v275
    %vm300 = vcmp.eq.s32.totalorder %v283, %v260
    %vm301 = vcmp.eq.s32.totalorder %v283, %v261
    %vm302 = vcmp.eq.s32.totalorder %v283, %v262
    %vm303 = vcmp.eq.s32.totalorder %v283, %v263
    %vm304 = vcmp.eq.s32.totalorder %v283, %v264
    %vm305 = vcmp.eq.s32.totalorder %v283, %v265
    %vm306 = vcmp.eq.s32.totalorder %v283, %v266
    %vm307 = vcmp.eq.s32.totalorder %v283, %v267
    %vm308 = vcmp.eq.s32.totalorder %v283, %v268
    %vm309 = vcmp.eq.s32.totalorder %v283, %v269
    %vm310 = vcmp.eq.s32.totalorder %v283, %v270
    %vm311 = vcmp.eq.s32.totalorder %v283, %v271
    %vm312 = vcmp.eq.s32.totalorder %v283, %v272
    %vm313 = vcmp.eq.s32.totalorder %v283, %v273
    %vm314 = vcmp.eq.s32.totalorder %v283, %v274
    %vm315 = vcmp.eq.s32.totalorder %v283, %v275
    %v316 = vsel %vm257, 1, 0
    %v317 = vsel %vm258, 1, 0
    %v318 = vlaneseq
    %v319 = vshrl.u32 %v318, 7
    %v320 = vsub.s32 0, %v319
    %v321 = vrot.slane %v316, %v320
    %v322 = vlaneseq
    %v323 = vshrl.u32 %v322, 7
    %v324 = vsub.s32 0, %v323
    %v325 = vrot.slane %v317, %v324
    %vm326 = vcmp.eq.s32.totalorder %v321, 1
    %vm327 = vcmp.eq.s32.totalorder %v325, 1
    %vm328 = vmand %vm284, %vm326
    %vm329 = vmand %vm285, %vm326
    %vm330 = vmand %vm286, %vm326
    %vm331 = vmand %vm287, %vm326
    %vm332 = vmand %vm288, %vm326
    %vm333 = vmand %vm289, %vm326
    %vm334 = vmand %vm290, %vm326
    %vm335 = vmand %vm291, %vm326
    %vm336 = vmand %vm292, %vm326
    %vm337 = vmand %vm293, %vm326
    %vm338 = vmand %vm294, %vm326
    %vm339 = vmand %vm295, %vm326
    %vm340 = vmand %vm296, %vm326
    %vm341 = vmand %vm297, %vm326
    %vm342 = vmand %vm298, %vm326
    %vm343 = vmand %vm299, %vm326
    %vm344 = vmand %vm300, %vm327
    %vm345 = vmand %vm301, %vm327
    %vm346 = vmand %vm302, %vm327
    %vm347 = vmand %vm303, %vm327
    %vm348 = vmand %vm304, %vm327
    %vm349 = vmand %vm305, %vm327
    %vm350 = vmand %vm306, %vm327
    %vm351 = vmand %vm307, %vm327
    %vm352 = vmand %vm308, %vm327
    %vm353 = vmand %vm309, %vm327
    %vm354 = vmand %vm310, %vm327
    %vm355 = vmand %vm311, %vm327
    %vm356 = vmand %vm312, %vm327
    %vm357 = vmand %vm313, %vm327
    %vm358 = vmand %vm314, %vm327
    %vm359 = vmand %vm315, %vm327
    %v360 = vsel %vm328, 1, 0
    %v361 = vsel %vm329, 1, 0
    %v362 = vsel %vm330, 1, 0
    %v363 = vsel %vm331, 1, 0
    %v364 = vsel %vm332, 1, 0
    %v365 = vsel %vm333, 1, 0
    %v366 = vsel %vm334, 1, 0
    %v367 = vsel %vm335, 1, 0
    %v368 = vsel %vm336, 1, 0
    %v369 = vsel %vm337, 1, 0
    %v370 = vsel %vm338, 1, 0
    %v371 = vsel %vm339, 1, 0
    %v372 = vsel %vm340, 1, 0
    %v373 = vsel %vm341, 1, 0
    %v374 = vsel %vm342, 1, 0
    %v375 = vsel %vm343, 1, 0
    %v376 = vsel %vm344, 1, 0
    %v377 = vsel %vm345, 1, 0
    %v378 = vsel %vm346, 1, 0
    %v379 = vsel %vm347, 1, 0
    %v380 = vsel %vm348, 1, 0
    %v381 = vsel %vm349, 1, 0
    %v382 = vsel %vm350, 1, 0
    %v383 = vsel %vm351, 1, 0
    %v384 = vsel %vm352, 1, 0
    %v385 = vsel %vm353, 1, 0
    %v386 = vsel %vm354, 1, 0
    %v387 = vsel %vm355, 1, 0
    %v388 = vsel %vm356, 1, 0
    %v389 = vsel %vm357, 1, 0
    %v390 = vsel %vm358, 1, 0
    %v391 = vsel %vm359, 1, 0
    %v392 = vcvt.s32.f32 %v360
    %v393 = vcvt.s32.f32 %v361
    %v394 = vcvt.s32.f32 %v362
    %v395 = vcvt.s32.f32 %v363
    %v396 = vcvt.s32.f32 %v364
    %v397 = vcvt.s32.f32 %v365
    %v398 = vcvt.s32.f32 %v366
    %v399 = vcvt.s32.f32 %v367
    %v400 = vcvt.s32.f32 %v368
    %v401 = vcvt.s32.f32 %v369
    %v402 = vcvt.s32.f32 %v370
    %v403 = vcvt.s32.f32 %v371
    %v404 = vcvt.s32.f32 %v372
    %v405 = vcvt.s32.f32 %v373
    %v406 = vcvt.s32.f32 %v374
    %v407 = vcvt.s32.f32 %v375
    %v408 = vcvt.s32.f32 %v376
    %v409 = vcvt.s32.f32 %v377
    %v410 = vcvt.s32.f32 %v378
    %v411 = vcvt.s32.f32 %v379
    %v412 = vcvt.s32.f32 %v380
    %v413 = vcvt.s32.f32 %v381
    %v414 = vcvt.s32.f32 %v382
    %v415 = vcvt.s32.f32 %v383
    %v416 = vcvt.s32.f32 %v384
    %v417 = vcvt.s32.f32 %v385
    %v418 = vcvt.s32.f32 %v386
    %v419 = vcvt.s32.f32 %v387
    %v420 = vcvt.s32.f32 %v388
    %v421 = vcvt.s32.f32 %v389
    %v422 = vcvt.s32.f32 %v390
    %v423 = vcvt.s32.f32 %v391
    %v424 = vpack.c.bf16 %v393, %v392
    %v425 = vpack.c.bf16 %v395, %v394
    %v426 = vpack.c.bf16 %v397, %v396
    %v427 = vpack.c.bf16 %v399, %v398
    %v428 = vpack.c.bf16 %v401, %v400
    %v429 = vpack.c.bf16 %v403, %v402
    %v430 = vpack.c.bf16 %v405, %v404
    %v431 = vpack.c.bf16 %v407, %v406
    %v432 = vpack.c.bf16 %v409, %v408
    %v433 = vpack.c.bf16 %v411, %v410
    %v434 = vpack.c.bf16 %v413, %v412
    %v435 = vpack.c.bf16 %v415, %v414
    %v436 = vpack.c.bf16 %v417, %v416
    %v437 = vpack.c.bf16 %v419, %v418
    %v438 = vpack.c.bf16 %v421, %v420
    %v439 = vpack.c.bf16 %v423, %v422
    %vm440 = vcmask 523264
    %v442 = vsel %vm440, %v424, 0
    %v445 = vsel %vm440, %v425, 0
    %v448 = vsel %vm440, %v426, 0
    %v451 = vsel %vm440, %v427, 0
    %v454 = vsel %vm440, %v428, 0
    %v457 = vsel %vm440, %v429, 0
    %v460 = vsel %vm440, %v430, 0
    %v463 = vsel %vm440, %v431, 0
    %465 = vmatprep.subr.bf16.mxu0 0
    %466 = vmatpush1.bf16.msra.mxu0 %v225
    %467 = vmatprep.subr.bf16.mxu0 0
    %468 = vmatpush1.bf16.msra.mxu0 %v226
    %469 = vmatprep.subr.bf16.mxu0 0
    %470 = vmatpush1.bf16.msra.mxu0 %v227
    %471 = vmatprep.subr.bf16.mxu0 0
    %472 = vmatpush1.bf16.msra.mxu0 %v228
    %473 = vmatprep.subr.bf16.mxu0 0
    %474 = vmatpush1.bf16.msra.mxu0 0
    %475 = vmatprep.subr.bf16.mxu0 0
    %476 = vmatpush1.bf16.msra.mxu0 0
    %477 = vmatprep.subr.bf16.mxu0 0
    %478 = vmatpush1.bf16.msra.mxu0 0
    %479 = vmatprep.subr.bf16.mxu0 0
    %480 = vmatpush1.bf16.msra.mxu0 0
    %481 = vmatprep.subr.bf16.mxu0 0
    %482 = vmatpush1.bf16.msra.mxu0 0
    %483 = vmatprep.subr.bf16.mxu0 0
    %484 = vmatpush1.bf16.msra.mxu0 0
    %485 = vmatprep.subr.bf16.mxu0 0
    %486 = vmatpush1.bf16.msra.mxu0 0
    %487 = vmatprep.subr.bf16.mxu0 0
    %488 = vmatpush1.bf16.msra.mxu0 0
    %489 = vmatprep.subr.bf16.mxu0 0
    %490 = vmatpush1.bf16.msra.mxu0 0
    %491 = vmatprep.subr.bf16.mxu0 0
    %492 = vmatpush1.bf16.msra.mxu0 0
    %493 = vmatprep.subr.bf16.mxu0 0
    %494 = vmatpush1.bf16.msra.mxu0 0
    %495 = vmatprep.subr.bf16.mxu0 0
    %496 = vmatpush1.bf16.msra.mxu0 0
    %497 = vmatprep.mubr.bf16.mxu0 0
    %498 = vmatmul.mubr.bf16.gmra.mrb[0].mxu0 %v442
    %v499 = vpop.f32.mrb[0].mxu0
    %v500 = vadd.f32 0.0, %v499
    %v501 = vpop.f32.mrb[0].mxu0
    %v502 = vpop.f32.mrb[0].mxu0
    %v503 = vadd.f32 0.0, %v502
    %v504 = vpop.f32.mrb[0].mxu0
    %505 = vmatprep.mubr.bf16.mxu0 0
    %506 = vmatmul.mubr.bf16.gmra.mrb[0].mxu0 %v445
    %v507 = vpop.f32.mrb[0].mxu0
    %v508 = vadd.f32 0.0, %v507
    %v509 = vpop.f32.mrb[0].mxu0
    %v510 = vpop.f32.mrb[0].mxu0
    %v511 = vadd.f32 0.0, %v510
    %v512 = vpop.f32.mrb[0].mxu0
    %513 = vmatprep.mubr.bf16.mxu0 0
    %514 = vmatmul.mubr.bf16.gmra.mrb[0].mxu0 %v448
    %v515 = vpop.f32.mrb[0].mxu0
    %v516 = vadd.f32 0.0, %v515
    %v517 = vpop.f32.mrb[0].mxu0
    %v518 = vpop.f32.mrb[0].mxu0
    %v519 = vadd.f32 0.0, %v518
    %v520 = vpop.f32.mrb[0].mxu0
    %521 = vmatprep.mubr.bf16.mxu0 0
    %522 = vmatmul.mubr.bf16.gmra.mrb[0].mxu0 %v451
    %v523 = vpop.f32.mrb[0].mxu0
    %v524 = vadd.f32 0.0, %v523
    %v525 = vpop.f32.mrb[0].mxu0
    %v526 = vpop.f32.mrb[0].mxu0
    %v527 = vadd.f32 0.0, %v526
    %v528 = vpop.f32.mrb[0].mxu0
    %529 = vmatprep.mubr.bf16.mxu0 0
    %530 = vmatmul.mubr.bf16.gmra.mrb[0].mxu0 %v454
    %v531 = vpop.f32.mrb[0].mxu0
    %v532 = vadd.f32 0.0, %v531
    %v533 = vpop.f32.mrb[0].mxu0
    %v534 = vpop.f32.mrb[0].mxu0
    %v535 = vadd.f32 0.0, %v534
    %v536 = vpop.f32.mrb[0].mxu0
    %537 = vmatprep.mubr.bf16.mxu0 0
    %538 = vmatmul.mubr.bf16.gmra.mrb[0].mxu0 %v457
    %v539 = vpop.f32.mrb[0].mxu0
    %v540 = vadd.f32 0.0, %v539
    %v541 = vpop.f32.mrb[0].mxu0
    %v542 = vpop.f32.mrb[0].mxu0
    %v543 = vadd.f32 0.0, %v542
    %v544 = vpop.f32.mrb[0].mxu0
    %545 = vmatprep.mubr.bf16.mxu0 0
    %546 = vmatmul.mubr.bf16.gmra.mrb[0].mxu0 %v460
    %v547 = vpop.f32.mrb[0].mxu0
    %v548 = vadd.f32 0.0, %v547
    %v549 = vpop.f32.mrb[0].mxu0
    %v550 = vpop.f32.mrb[0].mxu0
    %v551 = vadd.f32 0.0, %v550
    %v552 = vpop.f32.mrb[0].mxu0
    %553 = vmatprep.mubr.bf16.mxu0 0
    %554 = vmatmul.mubr.bf16.gmra.mrb[0].mxu0 %v463
    %v555 = vpop.f32.mrb[0].mxu0
    %v556 = vadd.f32 0.0, %v555
    %v557 = vpop.f32.mrb[0].mxu0
    %v558 = vpop.f32.mrb[0].mxu0
    %v559 = vadd.f32 0.0, %v558
    %v560 = vpop.f32.mrb[0].mxu0
    %561 = vdwg.mxu0
    %v563 = vsel %vm440, %v432, 0
    %v566 = vsel %vm440, %v433, 0
    %v569 = vsel %vm440, %v434, 0
    %v572 = vsel %vm440, %v435, 0
    %v575 = vsel %vm440, %v436, 0
    %v578 = vsel %vm440, %v437, 0
    %v581 = vsel %vm440, %v438, 0
    %v584 = vsel %vm440, %v439, 0
    %586 = vmatprep.subr.bf16.mxu0 0
    %587 = vmatpush1.bf16.msra.mxu0 %v229
    %588 = vmatprep.subr.bf16.mxu0 0
    %589 = vmatpush1.bf16.msra.mxu0 %v230
    %590 = vmatprep.subr.bf16.mxu0 0
    %591 = vmatpush1.bf16.msra.mxu0 %v231
    %592 = vmatprep.subr.bf16.mxu0 0
    %593 = vmatpush1.bf16.msra.mxu0 %v232
    %594 = vmatprep.subr.bf16.mxu0 0
    %595 = vmatpush1.bf16.msra.mxu0 0
    %596 = vmatprep.subr.bf16.mxu0 0
    %597 = vmatpush1.bf16.msra.mxu0 0
    %598 = vmatprep.subr.bf16.mxu0 0
    %599 = vmatpush1.bf16.msra.mxu0 0
    %600 = vmatprep.subr.bf16.mxu0 0
    %601 = vmatpush1.bf16.msra.mxu0 0
    %602 = vmatprep.subr.bf16.mxu0 0
    %603 = vmatpush1.bf16.msra.mxu0 0
    %604 = vmatprep.subr.bf16.mxu0 0
    %605 = vmatpush1.bf16.msra.mxu0 0
    %606 = vmatprep.subr.bf16.mxu0 0
    %607 = vmatpush1.bf16.msra.mxu0 0
    %608 = vmatprep.subr.bf16.mxu0 0
    %609 = vmatpush1.bf16.msra.mxu0 0
    %610 = vmatprep.subr.bf16.mxu0 0
    %611 = vmatpush1.bf16.msra.mxu0 0
    %612 = vmatprep.subr.bf16.mxu0 0
    %613 = vmatpush1.bf16.msra.mxu0 0
    %614 = vmatprep.subr.bf16.mxu0 0
    %615 = vmatpush1.bf16.msra.mxu0 0
    %616 = vmatprep.subr.bf16.mxu0 0
    %617 = vmatpush1.bf16.msra.mxu0 0
    %618 = vmatprep.mubr.bf16.mxu0 0
    %619 = vmatmul.mubr.bf16.gmra.mrb[0].mxu0 %v563
    %v620 = vpop.f32.mrb[0].mxu0
    %v621 = vadd.f32 0.0, %v620
    %v622 = vpop.f32.mrb[0].mxu0
    %v623 = vpop.f32.mrb[0].mxu0
    %v624 = vadd.f32 0.0, %v623
    %v625 = vpop.f32.mrb[0].mxu0
    %626 = vmatprep.mubr.bf16.mxu0 0
    %627 = vmatmul.mubr.bf16.gmra.mrb[0].mxu0 %v566
    %v628 = vpop.f32.mrb[0].mxu0
    %v629 = vadd.f32 0.0, %v628
    %v630 = vpop.f32.mrb[0].mxu0
    %v631 = vpop.f32.mrb[0].mxu0
    %v632 = vadd.f32 0.0, %v631
    %v633 = vpop.f32.mrb[0].mxu0
    %634 = vmatprep.mubr.bf16.mxu0 0
    %635 = vmatmul.mubr.bf16.gmra.mrb[0].mxu0 %v569
    %v636 = vpop.f32.mrb[0].mxu0
    %v637 = vadd.f32 0.0, %v636
    %v638 = vpop.f32.mrb[0].mxu0
    %v639 = vpop.f32.mrb[0].mxu0
    %v640 = vadd.f32 0.0, %v639
    %v641 = vpop.f32.mrb[0].mxu0
    %642 = vmatprep.mubr.bf16.mxu0 0
    %643 = vmatmul.mubr.bf16.gmra.mrb[0].mxu0 %v572
    %v644 = vpop.f32.mrb[0].mxu0
    %v645 = vadd.f32 0.0, %v644
    %v646 = vpop.f32.mrb[0].mxu0
    %v647 = vpop.f32.mrb[0].mxu0
    %v648 = vadd.f32 0.0, %v647
    %v649 = vpop.f32.mrb[0].mxu0
    %650 = vmatprep.mubr.bf16.mxu0 0
    %651 = vmatmul.mubr.bf16.gmra.mrb[0].mxu0 %v575
    %v652 = vpop.f32.mrb[0].mxu0
    %v653 = vadd.f32 0.0, %v652
    %v654 = vpop.f32.mrb[0].mxu0
    %v655 = vpop.f32.mrb[0].mxu0
    %v656 = vadd.f32 0.0, %v655
    %v657 = vpop.f32.mrb[0].mxu0
    %658 = vmatprep.mubr.bf16.mxu0 0
    %659 = vmatmul.mubr.bf16.gmra.mrb[0].mxu0 %v578
    %v660 = vpop.f32.mrb[0].mxu0
    %v661 = vadd.f32 0.0, %v660
    %v662 = vpop.f32.mrb[0].mxu0
    %v663 = vpop.f32.mrb[0].mxu0
    %v664 = vadd.f32 0.0, %v663
    %v665 = vpop.f32.mrb[0].mxu0
    %666 = vmatprep.mubr.bf16.mxu0 0
    %667 = vmatmul.mubr.bf16.gmra.mrb[0].mxu0 %v581
    %v668 = vpop.f32.mrb[0].mxu0
    %v669 = vadd.f32 0.0, %v668
    %v670 = vpop.f32.mrb[0].mxu0
    %v671 = vpop.f32.mrb[0].mxu0
    %v672 = vadd.f32 0.0, %v671
    %v673 = vpop.f32.mrb[0].mxu0
    %674 = vmatprep.mubr.bf16.mxu0 0
    %675 = vmatmul.mubr.bf16.gmra.mrb[0].mxu0 %v584
    %v676 = vpop.f32.mrb[0].mxu0
    %v677 = vadd.f32 0.0, %v676
    %v678 = vpop.f32.mrb[0].mxu0
    %v679 = vpop.f32.mrb[0].mxu0
    %v680 = vadd.f32 0.0, %v679
    %v681 = vpop.f32.mrb[0].mxu0
    %682 = vdwg.mxu0
    %v683 = vunpack.c.l.bf16 %v424
    %v684 = vunpack.c.h.bf16 %v424
    %v685 = vunpack.c.l.bf16 %v425
    %v686 = vunpack.c.h.bf16 %v425
    %v687 = vunpack.c.l.bf16 %v426
    %v688 = vunpack.c.h.bf16 %v426
    %v689 = vunpack.c.l.bf16 %v427
    %v690 = vunpack.c.h.bf16 %v427
    %v691 = vunpack.c.l.bf16 %v428
    %v692 = vunpack.c.h.bf16 %v428
    %v693 = vunpack.c.l.bf16 %v429
    %v694 = vunpack.c.h.bf16 %v429
    %v695 = vunpack.c.l.bf16 %v430
    %v696 = vunpack.c.h.bf16 %v430
    %v697 = vunpack.c.l.bf16 %v431
    %v698 = vunpack.c.h.bf16 %v431
    %v699 = vunpack.c.l.bf16 %v432
    %v700 = vunpack.c.h.bf16 %v432
    %v701 = vunpack.c.l.bf16 %v433
    %v702 = vunpack.c.h.bf16 %v433
    %v703 = vunpack.c.l.bf16 %v434
    %v704 = vunpack.c.h.bf16 %v434
    %v705 = vunpack.c.l.bf16 %v435
    %v706 = vunpack.c.h.bf16 %v435
    %v707 = vunpack.c.l.bf16 %v436
    %v708 = vunpack.c.h.bf16 %v436
    %v709 = vunpack.c.l.bf16 %v437
    %v710 = vunpack.c.h.bf16 %v437
    %v711 = vunpack.c.l.bf16 %v438
    %v712 = vunpack.c.h.bf16 %v438
    %v713 = vunpack.c.l.bf16 %v439
    %v714 = vunpack.c.h.bf16 %v439
    %v715 = vsel %vm440, %v683, 0.0
    %716 = vadd.xlane.f32.xlu0 %v715
    %v717 = vpop.xlane.xlu0 %716
    %v718 = vsel %vm440, %v684, 0.0
    %719 = vadd.xlane.f32.xlu0 %v718
    %v720 = vpop.xlane.xlu0 %719
    %v721 = vsel %vm440, %v685, 0.0
    %722 = vadd.xlane.f32.xlu0 %v721
    %v723 = vpop.xlane.xlu0 %722
    %v724 = vsel %vm440, %v686, 0.0
    %725 = vadd.xlane.f32.xlu0 %v724
    %v726 = vpop.xlane.xlu0 %725
    %v727 = vsel %vm440, %v687, 0.0
    %728 = vadd.xlane.f32.xlu0 %v727
    %v729 = vpop.xlane.xlu0 %728
    %v730 = vsel %vm440, %v688, 0.0
    %731 = vadd.xlane.f32.xlu0 %v730
    %v732 = vpop.xlane.xlu0 %731
    %v733 = vsel %vm440, %v689, 0.0
    %734 = vadd.xlane.f32.xlu0 %v733
    %v735 = vpop.xlane.xlu0 %734
    %v736 = vsel %vm440, %v690, 0.0
    %737 = vadd.xlane.f32.xlu0 %v736
    %v738 = vpop.xlane.xlu0 %737
    %v739 = vsel %vm440, %v691, 0.0
    %740 = vadd.xlane.f32.xlu0 %v739
    %v741 = vpop.xlane.xlu0 %740
    %v742 = vsel %vm440, %v692, 0.0
    %743 = vadd.xlane.f32.xlu0 %v742
    %v744 = vpop.xlane.xlu0 %743
    %v745 = vsel %vm440, %v693, 0.0
    %746 = vadd.xlane.f32.xlu0 %v745
    %v747 = vpop.xlane.xlu0 %746
    %v748 = vsel %vm440, %v694, 0.0
    %749 = vadd.xlane.f32.xlu0 %v748
    %v750 = vpop.xlane.xlu0 %749
    %v751 = vsel %vm440, %v695, 0.0
    %752 = vadd.xlane.f32.xlu0 %v751
    %v753 = vpop.xlane.xlu0 %752
    %v754 = vsel %vm440, %v696, 0.0
    %755 = vadd.xlane.f32.xlu0 %v754
    %v756 = vpop.xlane.xlu0 %755
    %v757 = vsel %vm440, %v697, 0.0
    %758 = vadd.xlane.f32.xlu0 %v757
    %v759 = vpop.xlane.xlu0 %758
    %v760 = vsel %vm440, %v698, 0.0
    %761 = vadd.xlane.f32.xlu0 %v760
    %v762 = vpop.xlane.xlu0 %761
    %v763 = vsel %vm440, %v699, 0.0
    %764 = vadd.xlane.f32.xlu0 %v763
    %v765 = vpop.xlane.xlu0 %764
    %v766 = vsel %vm440, %v700, 0.0
    %767 = vadd.xlane.f32.xlu0 %v766
    %v768 = vpop.xlane.xlu0 %767
    %v769 = vsel %vm440, %v701, 0.0
    %770 = vadd.xlane.f32.xlu0 %v769
    %v771 = vpop.xlane.xlu0 %770
    %v772 = vsel %vm440, %v702, 0.0
    %773 = vadd.xlane.f32.xlu0 %v772
    %v774 = vpop.xlane.xlu0 %773
    %v775 = vsel %vm440, %v703, 0.0
    %776 = vadd.xlane.f32.xlu0 %v775
    %v777 = vpop.xlane.xlu0 %776
    %v778 = vsel %vm440, %v704, 0.0
    %779 = vadd.xlane.f32.xlu0 %v778
    %v780 = vpop.xlane.xlu0 %779
    %v781 = vsel %vm440, %v705, 0.0
    %782 = vadd.xlane.f32.xlu0 %v781
    %v783 = vpop.xlane.xlu0 %782
    %v784 = vsel %vm440, %v706, 0.0
    %785 = vadd.xlane.f32.xlu0 %v784
    %v786 = vpop.xlane.xlu0 %785
    %v787 = vsel %vm440, %v707, 0.0
    %788 = vadd.xlane.f32.xlu0 %v787
    %v789 = vpop.xlane.xlu0 %788
    %v790 = vsel %vm440, %v708, 0.0
    %791 = vadd.xlane.f32.xlu0 %v790
    %v792 = vpop.xlane.xlu0 %791
    %v793 = vsel %vm440, %v709, 0.0
    %794 = vadd.xlane.f32.xlu0 %v793
    %v795 = vpop.xlane.xlu0 %794
    %v796 = vsel %vm440, %v710, 0.0
    %797 = vadd.xlane.f32.xlu0 %v796
    %v798 = vpop.xlane.xlu0 %797
    %v799 = vsel %vm440, %v711, 0.0
    %800 = vadd.xlane.f32.xlu0 %v799
    %v801 = vpop.xlane.xlu0 %800
    %v802 = vsel %vm440, %v712, 0.0
    %803 = vadd.xlane.f32.xlu0 %v802
    %v804 = vpop.xlane.xlu0 %803
    %v805 = vsel %vm440, %v713, 0.0
    %806 = vadd.xlane.f32.xlu0 %v805
    %v807 = vpop.xlane.xlu0 %806
    %v808 = vsel %vm440, %v714, 0.0
    %809 = vadd.xlane.f32.xlu0 %v808
    %v810 = vpop.xlane.xlu0 %809
    %v811 = vmax.f32 %v717, 1.0
    %v812 = vmax.f32 %v720, 1.0
    %v813 = vmax.f32 %v723, 1.0
    %v814 = vmax.f32 %v726, 1.0
    %v815 = vmax.f32 %v729, 1.0
    %v816 = vmax.f32 %v732, 1.0
    %v817 = vmax.f32 %v735, 1.0
    %v818 = vmax.f32 %v738, 1.0
    %v819 = vmax.f32 %v741, 1.0
    %v820 = vmax.f32 %v744, 1.0
    %v821 = vmax.f32 %v747, 1.0
    %v822 = vmax.f32 %v750, 1.0
    %v823 = vmax.f32 %v753, 1.0
    %v824 = vmax.f32 %v756, 1.0
    %v825 = vmax.f32 %v759, 1.0
    %v826 = vmax.f32 %v762, 1.0
    %v827 = vmax.f32 %v765, 1.0
    %v828 = vmax.f32 %v768, 1.0
    %v829 = vmax.f32 %v771, 1.0
    %v830 = vmax.f32 %v774, 1.0
    %v831 = vmax.f32 %v777, 1.0
    %v832 = vmax.f32 %v780, 1.0
    %v833 = vmax.f32 %v783, 1.0
    %v834 = vmax.f32 %v786, 1.0
    %v835 = vmax.f32 %v789, 1.0
    %v836 = vmax.f32 %v792, 1.0
    %v837 = vmax.f32 %v795, 1.0
    %v838 = vmax.f32 %v798, 1.0
    %v839 = vmax.f32 %v801, 1.0
    %v840 = vmax.f32 %v804, 1.0
    %v841 = vmax.f32 %v807, 1.0
    %v842 = vmax.f32 %v810, 1.0
    %v843 = vrcp.pop %v811
    %v844 = vrcp.pop %v812
    %v845 = vrcp.pop %v813
    %v846 = vrcp.pop %v814
    %v847 = vrcp.pop %v815
    %v848 = vrcp.pop %v816
    %v849 = vrcp.pop %v817
    %v850 = vrcp.pop %v818
    %v851 = vrcp.pop %v819
    %v852 = vrcp.pop %v820
    %v853 = vrcp.pop %v821
    %v854 = vrcp.pop %v822
    %v855 = vrcp.pop %v823
    %v856 = vrcp.pop %v824
    %v857 = vrcp.pop %v825
    %v858 = vrcp.pop %v826
    %v859 = vrcp.pop %v827
    %v860 = vrcp.pop %v828
    %v861 = vrcp.pop %v829
    %v862 = vrcp.pop %v830
    %v863 = vrcp.pop %v831
    %v864 = vrcp.pop %v832
    %v865 = vrcp.pop %v833
    %v866 = vrcp.pop %v834
    %v867 = vrcp.pop %v835
    %v868 = vrcp.pop %v836
    %v869 = vrcp.pop %v837
    %v870 = vrcp.pop %v838
    %v871 = vrcp.pop %v839
    %v872 = vrcp.pop %v840
    %v873 = vrcp.pop %v841
    %v874 = vrcp.pop %v842
    %v875 = vmul.f32 %v500, %v843
    %v876 = vmul.f32 %v503, %v844
    %v877 = vmul.f32 %v508, %v845
    %v878 = vmul.f32 %v511, %v846
    %v879 = vmul.f32 %v516, %v847
    %v880 = vmul.f32 %v519, %v848
    %v881 = vmul.f32 %v524, %v849
    %v882 = vmul.f32 %v527, %v850
    %v883 = vmul.f32 %v532, %v851
    %v884 = vmul.f32 %v535, %v852
    %v885 = vmul.f32 %v540, %v853
    %v886 = vmul.f32 %v543, %v854
    %v887 = vmul.f32 %v548, %v855
    %v888 = vmul.f32 %v551, %v856
    %v889 = vmul.f32 %v556, %v857
    %v890 = vmul.f32 %v559, %v858
    %v891 = vmul.f32 %v621, %v859
    %v892 = vmul.f32 %v624, %v860
    %v893 = vmul.f32 %v629, %v861
    %v894 = vmul.f32 %v632, %v862
    %v895 = vmul.f32 %v637, %v863
    %v896 = vmul.f32 %v640, %v864
    %v897 = vmul.f32 %v645, %v865
    %v898 = vmul.f32 %v648, %v866
    %v899 = vmul.f32 %v653, %v867
    %v900 = vmul.f32 %v656, %v868
    %v901 = vmul.f32 %v661, %v869
    %v902 = vmul.f32 %v664, %v870
    %v903 = vmul.f32 %v669, %v871
    %v904 = vmul.f32 %v672, %v872
    %v905 = vmul.f32 %v677, %v873
    %v906 = vmul.f32 %v680, %v874
    %907 = vst [vmem:[#allocation2] sm:$0xff] %v875
    %908 = vst [vmem:[#allocation2 + $0x8] sm:$0xff] %v876
    %909 = vst [vmem:[#allocation2 + $0x10] sm:$0xff] %v877
    %910 = vst [vmem:[#allocation2 + $0x18] sm:$0xff] %v878
    %911 = vst [vmem:[#allocation2 + $0x20] sm:$0xff] %v879
    %912 = vst [vmem:[#allocation2 + $0x28] sm:$0xff] %v880
    %913 = vst [vmem:[#allocation2 + $0x30] sm:$0xff] %v881
    %914 = vst [vmem:[#allocation2 + $0x38] sm:$0xff] %v882
    %915 = vst [vmem:[#allocation2 + $0x40] sm:$0xff] %v883
    %916 = vst [vmem:[#allocation2 + $0x48] sm:$0xff] %v884
    %917 = vst [vmem:[#allocation2 + $0x50] sm:$0xff] %v885
    %918 = vst [vmem:[#allocation2 + $0x58] sm:$0xff] %v886
    %919 = vst [vmem:[#allocation2 + $0x60] sm:$0xff] %v887
    %920 = vst [vmem:[#allocation2 + $0x68] sm:$0xff] %v888
    %921 = vst [vmem:[#allocation2 + $0x70] sm:$0xff] %v889
    %922 = vst [vmem:[#allocation2 + $0x78] sm:$0xff] %v890
    %923 = vst [vmem:[#allocation2 + $0x80] sm:$0xff] %v891
    %924 = vst [vmem:[#allocation2 + $0x88] sm:$0xff] %v892
    %925 = vst [vmem:[#allocation2 + $0x90] sm:$0xff] %v893
    %926 = vst [vmem:[#allocation2 + $0x98] sm:$0xff] %v894
    %927 = vst [vmem:[#allocation2 + $0xa0] sm:$0xff] %v895
    %928 = vst [vmem:[#allocation2 + $0xa8] sm:$0xff] %v896
    %929 = vst [vmem:[#allocation2 + $0xb0] sm:$0xff] %v897
    %930 = vst [vmem:[#allocation2 + $0xb8] sm:$0xff] %v898
    %931 = vst [vmem:[#allocation2 + $0xc0] sm:$0xff] %v899
    %932 = vst [vmem:[#allocation2 + $0xc8] sm:$0xff] %v900
    %933 = vst [vmem:[#allocation2 + $0xd0] sm:$0xff] %v901
    %934 = vst [vmem:[#allocation2 + $0xd8] sm:$0xff] %v902
    %935 = vst [vmem:[#allocation2 + $0xe0] sm:$0xff] %v903
    %936 = vst [vmem:[#allocation2 + $0xe8] sm:$0xff] %v904
    %937 = vst [vmem:[#allocation2 + $0xf0] sm:$0xff] %v905
    %938 = vst [vmem:[#allocation2 + $0xf8] sm:$0xff] %v906
    %vm939 = vcmask 7168
    %940 = vst.msk [vmem:[%s6] sm:$0xff] %vm939, %v717
    %941 = vst.msk [vmem:[%s6 + $0x8] sm:$0xff] %vm939, %v720
    %942 = vst.msk [vmem:[%s6 + $0x10] sm:$0xff] %vm939, %v723
    %943 = vst.msk [vmem:[%s6 + $0x18] sm:$0xff] %vm939, %v726
    %944 = vst.msk [vmem:[%s6 + $0x20] sm:$0xff] %vm939, %v729
    %945 = vst.msk [vmem:[%s6 + $0x28] sm:$0xff] %vm939, %v732
    %946 = vst.msk [vmem:[%s6 + $0x30] sm:$0xff] %vm939, %v735
    %947 = vst.msk [vmem:[%s6 + $0x38] sm:$0xff] %vm939, %v738
    %948 = vst.msk [vmem:[%s6 + $0x40] sm:$0xff] %vm939, %v741
    %949 = vst.msk [vmem:[%s6 + $0x48] sm:$0xff] %vm939, %v744
    %950 = vst.msk [vmem:[%s6 + $0x50] sm:$0xff] %vm939, %v747
    %951 = vst.msk [vmem:[%s6 + $0x58] sm:$0xff] %vm939, %v750
    %952 = vst.msk [vmem:[%s6 + $0x60] sm:$0xff] %vm939, %v753
    %953 = vst.msk [vmem:[%s6 + $0x68] sm:$0xff] %vm939, %v756
    %954 = vst.msk [vmem:[%s6 + $0x70] sm:$0xff] %vm939, %v759
    %955 = vst.msk [vmem:[%s6 + $0x78] sm:$0xff] %vm939, %v762
    %956 = vst.msk [vmem:[%s6 + $0x80] sm:$0xff] %vm939, %v765
    %957 = vst.msk [vmem:[%s6 + $0x88] sm:$0xff] %vm939, %v768
    %958 = vst.msk [vmem:[%s6 + $0x90] sm:$0xff] %vm939, %v771
    %959 = vst.msk [vmem:[%s6 + $0x98] sm:$0xff] %vm939, %v774
    %960 = vst.msk [vmem:[%s6 + $0xa0] sm:$0xff] %vm939, %v777
    %961 = vst.msk [vmem:[%s6 + $0xa8] sm:$0xff] %vm939, %v780
    %962 = vst.msk [vmem:[%s6 + $0xb0] sm:$0xff] %vm939, %v783
    %963 = vst.msk [vmem:[%s6 + $0xb8] sm:$0xff] %vm939, %v786
    %964 = vst.msk [vmem:[%s6 + $0xc0] sm:$0xff] %vm939, %v789
    %965 = vst.msk [vmem:[%s6 + $0xc8] sm:$0xff] %vm939, %v792
    %966 = vst.msk [vmem:[%s6 + $0xd0] sm:$0xff] %vm939, %v795
    %967 = vst.msk [vmem:[%s6 + $0xd8] sm:$0xff] %vm939, %v798
    %968 = vst.msk [vmem:[%s6 + $0xe0] sm:$0xff] %vm939, %v801
    %969 = vst.msk [vmem:[%s6 + $0xe8] sm:$0xff] %vm939, %v804
    %970 = vst.msk [vmem:[%s6 + $0xf0] sm:$0xff] %vm939, %v807
    %971 = vst.msk [vmem:[%s6 + $0xf8] sm:$0xff] %vm939, %v810
    // Predicated region
    $region22: #{tpu_custom_call.1} parent=1 // pred_check
      _
    $region23: #{tpu_custom_call.1} parent=1 // pred_check_branch
      %973 = sbr.rel (0) target = $region25
    $region24: #{tpu_custom_call.1} parent=1 // pred_region
      %s975 = ssub.s32 4096, 4096
      %976 = vsyncadd [#allocation3], %s975
      %s977 = sshll.u32 [#allocation2], 4
      %s978 = int_to_ptr.vmem [resolvable:$true] %s977
      %983 = dma.vmem_to_hbm [thread:$0]  %s978, 4096, %s5, [#allocation3], 128, 128, 8
    $region25: #{tpu_custom_call.1} parent=1 // pred_fallthru
      _
    // Predicated region
    $region26: #{tpu_custom_call.1} parent=1 // pred_check
      _
    $region27: #{tpu_custom_call.1} parent=1 // pred_check_branch
      %985 = sbr.rel (0) target = $region29
    $region28: #{tpu_custom_call.1} parent=1 // pred_region
      _
    $region29: #{tpu_custom_call.1} parent=1 // pred_fallthru
      _
    // Predicated region
    $region30: #{tpu_custom_call.1} parent=1 // pred_check
      _
    $region31: #{tpu_custom_call.1} parent=1 // pred_check_branch
      %987 = sbr.rel (0) target = $region33
    $region32: #{tpu_custom_call.1} parent=1 // pred_region
      %988 = dma.done [#allocation3], 4096
    $region33: #{tpu_custom_call.1} parent=1 // pred_fallthru
      _
    // Predicated region
    $region34: #{tpu_custom_call.1} parent=1 // pred_check
      _
    $region35: #{tpu_custom_call.1} parent=1 // pred_check_branch
      %990 = sbr.rel (0) target = $region37
    $region36: #{tpu_custom_call.1} parent=1 // pred_region
      _
    $region37: #{tpu_custom_call.1} parent=1 // pred_fallthru
      _
    %991 = vsyncpa [#allocation3], 1

</llo_original>
